<compile_context>
chip_gen: v5e
topology: v5e:2x2
jax: 0.10.0
libtpu: 0.0.40
codegen_flags: <defaults>
</compile_context>

<pallas_src>
import functools

import jax
import jax.numpy as jnp
from jax import lax
from jax.experimental import pallas as pl
from jax.experimental.pallas import tpu as pltpu


# ----------------------------------------------------------------------------
# Kernel: fused actor+critic MLP forward for one batch tile, all in VMEM.
# ----------------------------------------------------------------------------
def policy_kernel(
    x_ref,            # [TB, S]  f32
    w0_ref, b0_ref,   # [S, 2H] bf16, [1, 2H] f32        (actor|critic layer 0, lane-concat)
    w1_ref, b1_ref,   # fused: [2H, 2H]   split: [2, H, H]   ; [1, 2H] f32
    w2_ref, b2_ref,   # fused: [2H, 2H]   split: [2, H, H]   ; [1, 2H] f32
    wh_ref, bh_ref,   # fused: [2H, P]    split: [2, H, P]   ; [1, P]  f32
    out_ref,          # [TB, P] f32   (mean in lanes 0..A-1, value in lane A)
    *,
    action_size,
    hidden,
    split,
):
    cdt = w0_ref.dtype                               # matmul compute dtype (bf16)
    x = x_ref[...].astype(cdt)

    # ---- fused layer 0 (actor half | critic half) --------------------------
    h = jnp.tanh(jnp.dot(x, w0_ref[...], preferred_element_type=jnp.float32)
                 + b0_ref[...])

    if split:
        # v5e path: two [TB,H]x[H,H] dots per hidden layer (128x128 MXU fills exactly).
        H = hidden
        ha = h[:, :H].astype(cdt)
        hc = h[:, H:].astype(cdt)
        ha = jnp.tanh(jnp.dot(ha, w1_ref[0], preferred_element_type=jnp.float32)
                      + b1_ref[:, :H])
        hc = jnp.tanh(jnp.dot(hc, w1_ref[1], preferred_element_type=jnp.float32)
                      + b1_ref[:, H:])
        ha = jnp.tanh(jnp.dot(ha.astype(cdt), w2_ref[0], preferred_element_type=jnp.float32)
                      + b2_ref[:, :H])
        hc = jnp.tanh(jnp.dot(hc.astype(cdt), w2_ref[1], preferred_element_type=jnp.float32)
                      + b2_ref[:, H:])
        raw = (jnp.dot(ha.astype(cdt), wh_ref[0], preferred_element_type=jnp.float32)
               + jnp.dot(hc.astype(cdt), wh_ref[1], preferred_element_type=jnp.float32)
               + bh_ref[...])
    else:
        # v6e/v7x path: block-diagonal 2H-wide hidden layers (fills the 256-wide MXU).
        h = jnp.tanh(jnp.dot(h.astype(cdt), w1_ref[...], preferred_element_type=jnp.float32)
                     + b1_ref[...])
        h = jnp.tanh(jnp.dot(h.astype(cdt), w2_ref[...], preferred_element_type=jnp.float32)
                     + b2_ref[...])
        raw = (jnp.dot(h.astype(cdt), wh_ref[...], preferred_element_type=jnp.float32)
               + bh_ref[...])

    # tanh only on the mean lanes (0..A-1); value lane (A) stays linear.
    # (1, P) iota broadcast by jnp.where -> minimal VPU mask work.
    lane = lax.broadcasted_iota(jnp.int32, (1, raw.shape[-1]), 1)
    out_ref[...] = jnp.where(lane < action_size, jnp.tanh(raw), raw).astype(out_ref.dtype)


# ----------------------------------------------------------------------------
# One-time parameter packing (call OUTSIDE the jitted forward, reuse the result).
# ----------------------------------------------------------------------------
def _block_diag(a, b):
    ra, ca = a.shape
    rb, cb = b.shape
    top = jnp.concatenate([a, jnp.zeros((ra, cb), a.dtype)], axis=1)
    bot = jnp.concatenate([jnp.zeros((rb, ca), b.dtype), b], axis=1)
    return jnp.concatenate([top, bot], axis=0)


def _device_kind():
    try:
        return (jax.devices()[0].device_kind or "").lower()
    except Exception:
        return ""


def pack_policy_params(params, *, compute_dtype=jnp.bfloat16, force_split=None):
    """Build the fused weight set used by the kernel.  Run once, reuse across calls."""
    S = params["wa0"].shape[0]
    Ha = params["wa0"].shape[1]
    Hc = params["wc0"].shape[1]
    A = params["wa3"].shape[1]
    P = max(128, ((A + 1 + 127) // 128) * 128)       # lane-dense output width
    assert A + 1 <= P, "action_size too large for packed head layout"

    # Chip-aware layout choice: split hidden layers if the fused width exceeds the MXU.
    kind = _device_kind()
    mxu_width = 128 if "v5" in kind else 256
    split = (Ha + Hc > mxu_width) and (Ha == Hc)
    if force_split is not None:
        split = bool(force_split) and (Ha == Hc)

    f32 = jnp.float32
    w0 = jnp.concatenate([params["wa0"], params["wc0"]], axis=1).astype(compute_dtype)
    b0 = jnp.concatenate([params["ba0"], params["bc0"]], axis=1).astype(f32)
    b1 = jnp.concatenate([params["ba1"], params["bc1"]], axis=1).astype(f32)
    b2 = jnp.concatenate([params["ba2"], params["bc2"]], axis=1).astype(f32)

    bh = jnp.zeros((1, P), f32)
    bh = bh.at[:, :A].set(params["ba3"])
    bh = bh.at[:, A:A + 1].set(params["bc3"])

    if split:
        H = Ha
        w1 = jnp.stack([params["wa1"], params["wc1"]]).astype(compute_dtype)   # [2,H,H]
        w2 = jnp.stack([params["wa2"], params["wc2"]]).astype(compute_dtype)   # [2,H,H]
        wha = jnp.zeros((H, P), f32).at[:, :A].set(params["wa3"])
        whc = jnp.zeros((H, P), f32).at[:, A:A + 1].set(params["wc3"])
        wh = jnp.stack([wha, whc]).astype(compute_dtype)                       # [2,H,P]
    else:
        w1 = _block_diag(params["wa1"], params["wc1"]).astype(compute_dtype)   # [2H,2H]
        w2 = _block_diag(params["wa2"], params["wc2"]).astype(compute_dtype)   # [2H,2H]
        wh = jnp.zeros((Ha + Hc, P), f32)
        wh = wh.at[:Ha, :A].set(params["wa3"])
        wh = wh.at[Ha:, A:A + 1].set(params["wc3"])
        wh = wh.astype(compute_dtype)                                          # [2H,P]

    weights = dict(w0=w0, b0=b0, w1=w1, b1=b1, w2=w2, b2=b2, wh=wh, bh=bh,
                   scale=jax.nn.softplus(params["std"].astype(f32)))
    cfg = dict(action_size=A, hidden=Ha, split=split, out_lanes=P)
    return weights, cfg


# ----------------------------------------------------------------------------
# Wrapper (jit this; pass the pre-packed weights)
# ----------------------------------------------------------------------------
def policy_forward(state, weights, *, action_size, hidden, split, out_lanes,
                   batch_tile=512):
    """Returns (value [B,1], mean [B,A], scale [1,A])."""
    B, S = state.shape
    A, P = action_size, out_lanes

    # Batch-tile selection:
    #   * default: one big tile (<= batch_tile) -> no per-step pipeline overhead.
    #   * v7x: at least 2 grid steps when the batch permits, so the "parallel" batch
    #     axis is actually sharded across both TensorCores.
    kind = _device_kind()
    is_v7 = ("v7" in kind) or ("7x" in kind)
    TB = min(B, batch_tile)
    if is_v7 and 16 <= B <= 2 * batch_tile and B % 16 == 0:
        TB = B // 2

    # Ragged batches: zero-pad up to a tile multiple (no-op for the common case).
    Bp = -(-B // TB) * TB
    x = state if Bp == B else jnp.pad(state, ((0, Bp - B), (0, 0)))
    grid = (Bp // TB,)

    def full_spec(arr):
        shp = arr.shape
        return pl.BlockSpec(shp, lambda i, _n=len(shp): (0,) * _n)   # grid-invariant block

    in_specs = [
        pl.BlockSpec((TB, S), lambda i: (i, 0)),   # state tile
        full_spec(weights["w0"]), full_spec(weights["b0"]),
        full_spec(weights["w1"]), full_spec(weights["b1"]),
        full_spec(weights["w2"]), full_spec(weights["b2"]),
        full_spec(weights["wh"]), full_spec(weights["bh"]),
    ]
    out_specs = pl.BlockSpec((TB, P), lambda i: (i, 0))
    out_shape = jax.ShapeDtypeStruct((Bp, P), jnp.float32)

    out = pl.pallas_call(
        functools.partial(policy_kernel, action_size=A, hidden=hidden, split=split),
        out_shape=out_shape,
        grid_spec=pltpu.PrefetchScalarGridSpec(
            num_scalar_prefetch=0,
            grid=grid,
            in_specs=in_specs,
            out_specs=out_specs,
        ),
        compiler_params=pltpu.CompilerParams(
            # No shared output blocks -> batch axis is safely parallel (megacore on v7x).
            dimension_semantics=("parallel",),
            vmem_limit_bytes=32 * 1024 * 1024,
        ),
    )(x, weights["w0"], weights["b0"], weights["w1"], weights["b1"],
      weights["w2"], weights["b2"], weights["wh"], weights["bh"])

    mean = out[:B, :A]
    value = out[:B, A:A + 1]
    return value, mean, weights["scale"]


# ----------------------------------------------------------------------------
# Deterministic parameter initialization (mirrors init_layer: orthogonal weight,
# optional scale, zero bias). Weights stored as [in, out] (transposed vs PyTorch).
# ----------------------------------------------------------------------------
def orthogonal_weight(key, out_dim, in_dim, w_scale=1.0):
    a = jax.random.normal(key, (max(out_dim, in_dim), min(out_dim, in_dim)), jnp.float32)
    q, r = jnp.linalg.qr(a)
    q = q * jnp.sign(jnp.diagonal(r))[None, :]
    if out_dim < in_dim:
        q = q.T
    w = q[:out_dim, :in_dim] * w_scale          # PyTorch layout [out, in]
    return jnp.asarray(w.T, jnp.float32)        # kernel layout [in, out]


def make_params(key, state_size, action_size, actor_units=128, critic_units=128):
    ks = jax.random.split(key, 8)
    H, Hc, S, A = actor_units, critic_units, state_size, action_size
    return {
        # actor
        "wa0": orthogonal_weight(ks[0], H, S),  "ba0": jnp.zeros((1, H), jnp.float32),
        "wa1": orthogonal_weight(ks[1], H, H),  "ba1": jnp.zeros((1, H), jnp.float32),
        "wa2": orthogonal_weight(ks[2], H, H),  "ba2": jnp.zeros((1, H), jnp.float32),
        "wa3": orthogonal_weight(ks[3], A, H, 0.001), "ba3": jnp.zeros((1, A), jnp.float32),
        # critic
        "wc0": orthogonal_weight(ks[4], Hc, S), "bc0": jnp.zeros((1, Hc), jnp.float32),
        "wc1": orthogonal_weight(ks[5], Hc, Hc), "bc1": jnp.zeros((1, Hc), jnp.float32),
        "wc2": orthogonal_weight(ks[6], Hc, Hc), "bc2": jnp.zeros((1, Hc), jnp.float32),
        "wc3": orthogonal_weight(ks[7], 1, Hc, 0.001), "bc3": jnp.zeros((1, 1), jnp.float32),
        # Normal-distribution pre-softplus scale parameter (zeros, as in the module)
        "std": jnp.zeros((1, A), jnp.float32),
    }


# ----------------------------------------------------------------------------
# Pure-JAX reference for validation (f32)
# ----------------------------------------------------------------------------
def policy_reference(state, p):
    h = jnp.tanh(state @ p["wa0"] + p["ba0"])
    h = jnp.tanh(h @ p["wa1"] + p["ba1"])
    h = jnp.tanh(h @ p["wa2"] + p["ba2"])
    mean = jnp.tanh(h @ p["wa3"] + p["ba3"])
    g = jnp.tanh(state @ p["wc0"] + p["bc0"])
    g = jnp.tanh(g @ p["wc1"] + p["bc1"])
    g = jnp.tanh(g @ p["wc2"] + p["bc2"])
    value = g @ p["wc3"] + p["bc3"]
    scale = jax.nn.softplus(p["std"])
    return value, mean, scale


if __name__ == "__main__":
    key = jax.random.PRNGKey(0)
    k_param, k_state = jax.random.split(key)

    B, S, A = 16, 24, 4
    params = make_params(k_param, state_size=S, action_size=A,
                         actor_units=128, critic_units=128)
    state = jax.random.normal(k_state, (B, S), jnp.float32)

    # Pack ONCE (outside jit); reuse the packed weights for every forward call.
    weights, cfg = pack_policy_params(params, compute_dtype=jnp.bfloat16)
    fwd = jax.jit(functools.partial(policy_forward, batch_tile=512, **cfg))

    value, mean, scale = fwd(state, weights)
    jax.block_until_ready((value, mean, scale))

    v_ref, m_ref, s_ref = policy_reference(state, params)
    assert value.shape == (B, 1) and mean.shape == (B, A) and scale.shape == (1, A)
    # bf16 matmuls (f32 accumulate) vs f32 reference: loosened tolerance.
    assert jnp.allclose(value, v_ref, atol=2e-3, rtol=2e-2)
    assert jnp.allclose(mean, m_ref, atol=2e-3, rtol=2e-2)
    assert jnp.allclose(scale, s_ref, atol=1e-6, rtol=1e-6)

    print("KERNEL_OK")
</pallas_src>

<mosaic_0001>
module attributes {stable_mosaic.version = 11 : i64} {
  func.func @policy_kernel(%arg0: i32, %arg1: memref<16x24xf32, #tpu.memory_space<vmem>>, %arg2: memref<24x256xbf16, #tpu.memory_space<vmem>>, %arg3: memref<1x256xf32, #tpu.memory_space<vmem>>, %arg4: memref<256x256xbf16, #tpu.memory_space<vmem>>, %arg5: memref<1x256xf32, #tpu.memory_space<vmem>>, %arg6: memref<256x256xbf16, #tpu.memory_space<vmem>>, %arg7: memref<1x256xf32, #tpu.memory_space<vmem>>, %arg8: memref<256x128xbf16, #tpu.memory_space<vmem>>, %arg9: memref<1x128xf32, #tpu.memory_space<vmem>>, %arg10: memref<16x128xf32, #tpu.memory_space<vmem>>) attributes {dimension_semantics = [#tpu.dimension_semantics<parallel>], iteration_bounds = array<i64: 1>, scalar_prefetch = 0 : i64, scratch_operands = 0 : i64, tpu.core_type = #tpu.core_type<tc>, window_params = [{transform_indices = @transform_0, window_bounds = array<i64: 16, 24>}, {pipeline_mode = #tpu.pipeline_mode<synchronous>, transform_indices = @transform_1, window_bounds = array<i64: 24, 256>}, {pipeline_mode = #tpu.pipeline_mode<synchronous>, transform_indices = @transform_2, window_bounds = array<i64: 1, 256>}, {pipeline_mode = #tpu.pipeline_mode<synchronous>, transform_indices = @transform_3, window_bounds = array<i64: 256, 256>}, {pipeline_mode = #tpu.pipeline_mode<synchronous>, transform_indices = @transform_4, window_bounds = array<i64: 1, 256>}, {pipeline_mode = #tpu.pipeline_mode<synchronous>, transform_indices = @transform_5, window_bounds = array<i64: 256, 256>}, {pipeline_mode = #tpu.pipeline_mode<synchronous>, transform_indices = @transform_6, window_bounds = array<i64: 1, 256>}, {pipeline_mode = #tpu.pipeline_mode<synchronous>, transform_indices = @transform_7, window_bounds = array<i64: 256, 128>}, {pipeline_mode = #tpu.pipeline_mode<synchronous>, transform_indices = @transform_8, window_bounds = array<i64: 1, 128>}, {transform_indices = @transform_9, window_bounds = array<i64: 16, 128>}]} {
    %c0 = arith.constant 0 : index
    %c0_0 = arith.constant 0 : index
    %0 = vector.load %arg1[%c0, %c0_0] : memref<16x24xf32, #tpu.memory_space<vmem>>, vector<16x24xf32>
    %1 = arith.truncf %0 : vector<16x24xf32> to vector<16x24xbf16>
    %c0_1 = arith.constant 0 : index
    %c0_2 = arith.constant 0 : index
    %2 = vector.load %arg2[%c0_1, %c0_2] : memref<24x256xbf16, #tpu.memory_space<vmem>>, vector<24x256xbf16>
    %cst = arith.constant dense<0.000000e+00> : vector<16x256xf32>
    %3 = tpu.matmul %1, %2, %cst {dimension_numbers = #tpu.dot_dimension_numbers<[1], [0], [0], [1], [0, 0, 1, 1], [], []>} : vector<16x24xbf16>, vector<24x256xbf16>, vector<16x256xf32> -> vector<16x256xf32>
    %c0_3 = arith.constant 0 : index
    %c0_4 = arith.constant 0 : index
    %4 = vector.load %arg3[%c0_3, %c0_4] : memref<1x256xf32, #tpu.memory_space<vmem>>, vector<1x256xf32>
    %5 = vector.broadcast %4 : vector<1x256xf32> to vector<16x256xf32>
    %6 = arith.addf %3, %5 : vector<16x256xf32>
    %7 = math.tanh %6 : vector<16x256xf32>
    %8 = arith.truncf %7 : vector<16x256xf32> to vector<16x256xbf16>
    %c0_5 = arith.constant 0 : index
    %c0_6 = arith.constant 0 : index
    %9 = vector.load %arg4[%c0_5, %c0_6] : memref<256x256xbf16, #tpu.memory_space<vmem>>, vector<256x256xbf16>
    %cst_7 = arith.constant dense<0.000000e+00> : vector<16x256xf32>
    %10 = tpu.matmul %8, %9, %cst_7 {dimension_numbers = #tpu.dot_dimension_numbers<[1], [0], [0], [1], [0, 0, 1, 1], [], []>} : vector<16x256xbf16>, vector<256x256xbf16>, vector<16x256xf32> -> vector<16x256xf32>
    %c0_8 = arith.constant 0 : index
    %c0_9 = arith.constant 0 : index
    %11 = vector.load %arg5[%c0_8, %c0_9] : memref<1x256xf32, #tpu.memory_space<vmem>>, vector<1x256xf32>
    %12 = vector.broadcast %11 : vector<1x256xf32> to vector<16x256xf32>
    %13 = arith.addf %10, %12 : vector<16x256xf32>
    %14 = math.tanh %13 : vector<16x256xf32>
    %15 = arith.truncf %14 : vector<16x256xf32> to vector<16x256xbf16>
    %c0_10 = arith.constant 0 : index
    %c0_11 = arith.constant 0 : index
    %16 = vector.load %arg6[%c0_10, %c0_11] : memref<256x256xbf16, #tpu.memory_space<vmem>>, vector<256x256xbf16>
    %cst_12 = arith.constant dense<0.000000e+00> : vector<16x256xf32>
    %17 = tpu.matmul %15, %16, %cst_12 {dimension_numbers = #tpu.dot_dimension_numbers<[1], [0], [0], [1], [0, 0, 1, 1], [], []>} : vector<16x256xbf16>, vector<256x256xbf16>, vector<16x256xf32> -> vector<16x256xf32>
    %c0_13 = arith.constant 0 : index
    %c0_14 = arith.constant 0 : index
    %18 = vector.load %arg7[%c0_13, %c0_14] : memref<1x256xf32, #tpu.memory_space<vmem>>, vector<1x256xf32>
    %19 = vector.broadcast %18 : vector<1x256xf32> to vector<16x256xf32>
    %20 = arith.addf %17, %19 : vector<16x256xf32>
    %21 = math.tanh %20 : vector<16x256xf32>
    %22 = arith.truncf %21 : vector<16x256xf32> to vector<16x256xbf16>
    %c0_15 = arith.constant 0 : index
    %c0_16 = arith.constant 0 : index
    %23 = vector.load %arg8[%c0_15, %c0_16] : memref<256x128xbf16, #tpu.memory_space<vmem>>, vector<256x128xbf16>
    %cst_17 = arith.constant dense<0.000000e+00> : vector<16x128xf32>
    %24 = tpu.matmul %22, %23, %cst_17 {dimension_numbers = #tpu.dot_dimension_numbers<[1], [0], [0], [1], [0, 0, 1, 1], [], []>} : vector<16x256xbf16>, vector<256x128xbf16>, vector<16x128xf32> -> vector<16x128xf32>
    %c0_18 = arith.constant 0 : index
    %c0_19 = arith.constant 0 : index
    %25 = vector.load %arg9[%c0_18, %c0_19] : memref<1x128xf32, #tpu.memory_space<vmem>>, vector<1x128xf32>
    %26 = vector.broadcast %25 : vector<1x128xf32> to vector<16x128xf32>
    %27 = arith.addf %24, %26 : vector<16x128xf32>
    %28 = tpu.iota {dimensions = array<i32: 1>} : vector<1x128xi32>
    %c4_i32 = arith.constant 4 : i32
    %29 = vector.broadcast %c4_i32 : i32 to vector<1x128xi32>
    %30 = arith.cmpi slt, %28, %29 : vector<1x128xi32>
    %31 = math.tanh %27 : vector<16x128xf32>
    %32 = vector.shape_cast %30 : vector<1x128xi1> to vector<1x128xi1>
    %33 = vector.broadcast %32 : vector<1x128xi1> to vector<16x128xi1>
    %34 = arith.select %33, %31, %27 : vector<16x128xi1>, vector<16x128xf32>
    %c0_20 = arith.constant 0 : index
    %c0_21 = arith.constant 0 : index
    %35 = vector.load %arg10[%c0_20, %c0_21] : memref<16x128xf32, #tpu.memory_space<vmem>>, vector<16x128xf32>
    tpu.vector_store %arg10[%c0_20, %c0_21], %34 {strides = array<i32>} : memref<16x128xf32, #tpu.memory_space<vmem>>, vector<16x128xf32>,
    return
  }
  func.func @transform_0(%arg0: i32) -> (i32, i32) {
    %c0_i32 = arith.constant 0 : i32
    %c0_i32_0 = arith.constant 0 : i32
    return %arg0, %c0_i32 : i32, i32
  }
  func.func @transform_1(%arg0: i32) -> (i32, i32) {
    %c0_i32 = arith.constant 0 : i32
    %c0_i32_0 = arith.constant 0 : i32
    %c0_i32_1 = arith.constant 0 : i32
    return %c0_i32, %c0_i32_0 : i32, i32
  }
  func.func @transform_2(%arg0: i32) -> (i32, i32) {
    %c0_i32 = arith.constant 0 : i32
    %c0_i32_0 = arith.constant 0 : i32
    %c0_i32_1 = arith.constant 0 : i32
    return %c0_i32, %c0_i32_0 : i32, i32
  }
  func.func @transform_3(%arg0: i32) -> (i32, i32) {
    %c0_i32 = arith.constant 0 : i32
    %c0_i32_0 = arith.constant 0 : i32
    %c0_i32_1 = arith.constant 0 : i32
    return %c0_i32, %c0_i32_0 : i32, i32
  }
  func.func @transform_4(%arg0: i32) -> (i32, i32) {
    %c0_i32 = arith.constant 0 : i32
    %c0_i32_0 = arith.constant 0 : i32
    %c0_i32_1 = arith.constant 0 : i32
    return %c0_i32, %c0_i32_0 : i32, i32
  }
  func.func @transform_5(%arg0: i32) -> (i32, i32) {
    %c0_i32 = arith.constant 0 : i32
    %c0_i32_0 = arith.constant 0 : i32
    %c0_i32_1 = arith.constant 0 : i32
    return %c0_i32, %c0_i32_0 : i32, i32
  }
  func.func @transform_6(%arg0: i32) -> (i32, i32) {
    %c0_i32 = arith.constant 0 : i32
    %c0_i32_0 = arith.constant 0 : i32
    %c0_i32_1 = arith.constant 0 : i32
    return %c0_i32, %c0_i32_0 : i32, i32
  }
  func.func @transform_7(%arg0: i32) -> (i32, i32) {
    %c0_i32 = arith.constant 0 : i32
    %c0_i32_0 = arith.constant 0 : i32
    %c0_i32_1 = arith.constant 0 : i32
    return %c0_i32, %c0_i32_0 : i32, i32
  }
  func.func @transform_8(%arg0: i32) -> (i32, i32) {
    %c0_i32 = arith.constant 0 : i32
    %c0_i32_0 = arith.constant 0 : i32
    %c0_i32_1 = arith.constant 0 : i32
    return %c0_i32, %c0_i32_0 : i32, i32
  }
  func.func @transform_9(%arg0: i32) -> (i32, i32) {
    %c0_i32 = arith.constant 0 : i32
    %c0_i32_0 = arith.constant 0 : i32
    return %arg0, %c0_i32 : i32, i32
  }
}

</mosaic_0001>

<llo_original>
// kernel: policy_forward.1
$region0: #{policy_forward.1}
  #allocation0 [shape = 'u32[]', space=smem, size = 0x4, offset = 0x4, fixed_abs, tag = 'smem constant byte address 0x4 - core index']
  #allocation1 [shape = 'u32[72,128]{1,0:T(1,128)}', space=vmem, size = 0x9000, scoped, tag = 'internal scratch']
  %s0 = inlined_call_operand.hbm [shape: f32[16,24], index: 0, kind: input, shape index: {}]
  %s1 = inlined_call_operand.hbm [shape: bf16[24,256], index: 1, kind: input, shape index: {}]
  %s2 = inlined_call_operand.vmem [shape: f32[1,256], index: 2, kind: input, shape index: {}]
  %s3 = inlined_call_operand.hbm [shape: bf16[256,256], index: 3, kind: input, shape index: {}]
  %s4 = inlined_call_operand.vmem [shape: f32[1,256], index: 4, kind: input, shape index: {}]
  %s5 = inlined_call_operand.hbm [shape: bf16[256,256], index: 5, kind: input, shape index: {}]
  %s6 = inlined_call_operand.hbm [shape: f32[1,256], index: 6, kind: input, shape index: {}]
  %s7 = inlined_call_operand.hbm [shape: bf16[256,128], index: 7, kind: input, shape index: {}]
  %s8 = inlined_call_operand.hbm [shape: f32[1,128], index: 8, kind: input, shape index: {}]
  %s9 = inlined_call_operand.vmem [shape: f32[16,128], index: 9, kind: output, shape index: {}]
  %s10 = sld [smem:[#allocation0]]
  $region74: #{policy_forward.1} parent=0
    _
  %s12 = ssub.s32 1, %s10
  %s13 = scalar_select 0, %s12, %s10
  $region1: #{policy_forward.1} parent=0
    #allocation2 [shape = 'u8[8192]{0}', space=vmem, size = 0x2000, scoped, tag = 'input window, operand 0, single buffered']
    #allocation3 [shape = 's32[1]{0}', space=sflag, size = 0x4, scoped, tag = 'scoped memory for policy_forward.1']
    #allocation4 [shape = 'u8[12288]{0}', space=vmem, size = 0x3000, scoped, tag = 'input window, operand 1, single buffered']
    #allocation5 [shape = 's32[1]{0}', space=sflag, size = 0x4, scoped, tag = 'scoped memory for policy_forward.1']
    #allocation6 [shape = 'u8[131072]{0}', space=vmem, size = 0x20000, scoped, tag = 'input window, operand 3, single buffered']
    #allocation7 [shape = 'u8[131072]{0}', space=vmem, size = 0x20000, scoped, tag = 'input window, operand 5, single buffered']
    #allocation8 [shape = 's32[1]{0}', space=sflag, size = 0x4, scoped, tag = 'scoped memory for policy_forward.1']
    #allocation9 [shape = 'u8[1024]{0}', space=vmem, size = 0x400, scoped, tag = 'input window, operand 6, single buffered']
    #allocation10 [shape = 'u8[65536]{0}', space=vmem, size = 0x10000, scoped, tag = 'input window, operand 7, single buffered']
    #allocation11 [shape = 's32[1]{0}', space=sflag, size = 0x4, scoped, tag = 'scoped memory for policy_forward.1']
    #allocation12 [shape = 'u8[512]{0}', space=vmem, size = 0x400, scoped, tag = 'input window, operand 8, single buffered']
    %14 = vsyncpa [#allocation3], 0
    %15 = vsyncpa [#allocation5], 0
    %16 = vsyncpa [#allocation8], 0
    %17 = vsyncpa [#allocation11], 0
    // Predicated region
    $region2: #{policy_forward.1} parent=1 // pred_check
      _
    $region3: #{policy_forward.1} parent=1 // pred_check_branch
      %19 = sbr.rel (0) target = $region5
    $region4: #{policy_forward.1} parent=1 // pred_region
      %21 = vsyncadd [#allocation3], 0
      %s22 = sshll.u32 %s0, 4
      %s23 = int_to_ptr.hbm [resolvable:$true] %s22
      %s24 = sshll.u32 [#allocation2], 4
      %s25 = int_to_ptr.vmem [resolvable:$true] %s24
      %30 = dma.hbm_to_vmem [thread:$0]  %s23, 256, %s25, [#allocation3], 128, 128, 8
    $region5: #{policy_forward.1} parent=1 // pred_fallthru
      _
    // Predicated region
    $region6: #{policy_forward.1} parent=1 // pred_check
      _
    $region7: #{policy_forward.1} parent=1 // pred_check_branch
      %32 = sbr.rel (0) target = $region9
    $region8: #{policy_forward.1} parent=1 // pred_region
      %34 = vsyncadd [#allocation5], 0
      %s35 = sshll.u32 %s1, 4
      %s36 = int_to_ptr.hbm [resolvable:$true] %s35
      %s37 = sshll.u32 [#allocation4], 4
      %s38 = int_to_ptr.vmem [resolvable:$true] %s37
      %43 = dma.hbm_to_vmem [thread:$0]  %s36, 384, %s38, [#allocation5], 128, 128, 8
    $region9: #{policy_forward.1} parent=1 // pred_fallthru
      _
    // Predicated region
    $region10: #{policy_forward.1} parent=1 // pred_check
      _
    $region11: #{policy_forward.1} parent=1 // pred_check_branch
      %45 = sbr.rel (0) target = $region13
    $region12: #{policy_forward.1} parent=1 // pred_region
      _
    $region13: #{policy_forward.1} parent=1 // pred_fallthru
      _
    // Predicated region
    $region14: #{policy_forward.1} parent=1 // pred_check
      _
    $region15: #{policy_forward.1} parent=1 // pred_check_branch
      %47 = sbr.rel (0) target = $region17
    $region16: #{policy_forward.1} parent=1 // pred_region
      %49 = vsyncadd [#allocation5], 0
      %s50 = sshll.u32 %s3, 4
      %s51 = int_to_ptr.hbm [resolvable:$true] %s50
      %s52 = sshll.u32 [#allocation6], 4
      %s53 = int_to_ptr.vmem [resolvable:$true] %s52
      %58 = dma.hbm_to_vmem [thread:$0]  %s51, 4096, %s53, [#allocation5], 128, 128, 8
    $region17: #{policy_forward.1} parent=1 // pred_fallthru
      _
    // Predicated region
    $region18: #{policy_forward.1} parent=1 // pred_check
      _
    $region19: #{policy_forward.1} parent=1 // pred_check_branch
      %60 = sbr.rel (0) target = $region21
    $region20: #{policy_forward.1} parent=1 // pred_region
      _
    $region21: #{policy_forward.1} parent=1 // pred_fallthru
      _
    // Predicated region
    $region22: #{policy_forward.1} parent=1 // pred_check
      _
    $region23: #{policy_forward.1} parent=1 // pred_check_branch
      %62 = sbr.rel (0) target = $region25
    $region24: #{policy_forward.1} parent=1 // pred_region
      %64 = vsyncadd [#allocation8], 0
      %s65 = sshll.u32 %s5, 4
      %s66 = int_to_ptr.hbm [resolvable:$true] %s65
      %s67 = sshll.u32 [#allocation7], 4
      %s68 = int_to_ptr.vmem [resolvable:$true] %s67
      %73 = dma.hbm_to_vmem [thread:$0]  %s66, 4096, %s68, [#allocation8], 128, 128, 8
    $region25: #{policy_forward.1} parent=1 // pred_fallthru
      _
    // Predicated region
    $region26: #{policy_forward.1} parent=1 // pred_check
      _
    $region27: #{policy_forward.1} parent=1 // pred_check_branch
      %75 = sbr.rel (0) target = $region29
    $region28: #{policy_forward.1} parent=1 // pred_region
      %77 = vsyncadd [#allocation8], 0
      %s79 = sshll.u32 %s6, 4
      %s80 = int_to_ptr.hbm [resolvable:$true] %s79
      %s81 = sshll.u32 [#allocation9], 4
      %s82 = int_to_ptr.vmem [resolvable:$true] %s81
      %84 = dma.hbm_to_vmem [thread:$0]  %s80, 32, %s82, [#allocation8]
    $region29: #{policy_forward.1} parent=1 // pred_fallthru
      _
    // Predicated region
    $region30: #{policy_forward.1} parent=1 // pred_check
      _
    $region31: #{policy_forward.1} parent=1 // pred_check_branch
      %86 = sbr.rel (0) target = $region33
    $region32: #{policy_forward.1} parent=1 // pred_region
      %88 = vsyncadd [#allocation11], 0
      %s89 = sshll.u32 %s7, 4
      %s90 = int_to_ptr.hbm [resolvable:$true] %s89
      %s91 = sshll.u32 [#allocation10], 4
      %s92 = int_to_ptr.vmem [resolvable:$true] %s91
      %97 = dma.hbm_to_vmem [thread:$0]  %s90, 2048, %s92, [#allocation11], 64, 64, 4
    $region33: #{policy_forward.1} parent=1 // pred_fallthru
      _
    // Predicated region
    $region34: #{policy_forward.1} parent=1 // pred_check
      _
    $region35: #{policy_forward.1} parent=1 // pred_check_branch
      %99 = sbr.rel (0) target = $region37
    $region36: #{policy_forward.1} parent=1 // pred_region
      %101 = vsyncadd [#allocation11], 0
      %s103 = sshll.u32 %s8, 4
      %s104 = int_to_ptr.hbm [resolvable:$true] %s103
      %s105 = sshll.u32 [#allocation12], 4
      %s106 = int_to_ptr.vmem [resolvable:$true] %s105
      %108 = dma.hbm_to_vmem [thread:$0]  %s104, 16, %s106, [#allocation11]
    $region37: #{policy_forward.1} parent=1 // pred_fallthru
      _
    // Predicated region
    $region38: #{policy_forward.1} parent=1 // pred_check
      _
    $region39: #{policy_forward.1} parent=1 // pred_check_branch
      %110 = sbr.rel (0) target = $region41
    $region40: #{policy_forward.1} parent=1 // pred_region
      %112 = dma.done [#allocation3], 256
    $region41: #{policy_forward.1} parent=1 // pred_fallthru
      _
    // Predicated region
    $region42: #{policy_forward.1} parent=1 // pred_check
      _
    $region43: #{policy_forward.1} parent=1 // pred_check_branch
      %114 = sbr.rel (0) target = $region45
    $region44: #{policy_forward.1} parent=1 // pred_region
      %116 = dma.done [#allocation5], 384
    $region45: #{policy_forward.1} parent=1 // pred_fallthru
      _
    // Predicated region
    $region46: #{policy_forward.1} parent=1 // pred_check
      _
    $region47: #{policy_forward.1} parent=1 // pred_check_branch
      %118 = sbr.rel (0) target = $region49
    $region48: #{policy_forward.1} parent=1 // pred_region
      %120 = dma.done [#allocation5], 4096
    $region49: #{policy_forward.1} parent=1 // pred_fallthru
      _
    // Predicated region
    $region50: #{policy_forward.1} parent=1 // pred_check
      _
    $region51: #{policy_forward.1} parent=1 // pred_check_branch
      %122 = sbr.rel (0) target = $region53
    $region52: #{policy_forward.1} parent=1 // pred_region
      %124 = dma.done [#allocation8], 4096
    $region53: #{policy_forward.1} parent=1 // pred_fallthru
      _
    // Predicated region
    $region54: #{policy_forward.1} parent=1 // pred_check
      _
    $region55: #{policy_forward.1} parent=1 // pred_check_branch
      %126 = sbr.rel (0) target = $region57
    $region56: #{policy_forward.1} parent=1 // pred_region
      %128 = dma.done [#allocation8], 32
    $region57: #{policy_forward.1} parent=1 // pred_fallthru
      _
    // Predicated region
    $region58: #{policy_forward.1} parent=1 // pred_check
      _
    $region59: #{policy_forward.1} parent=1 // pred_check_branch
      %130 = sbr.rel (0) target = $region61
    $region60: #{policy_forward.1} parent=1 // pred_region
      %132 = dma.done [#allocation11], 2048
    $region61: #{policy_forward.1} parent=1 // pred_fallthru
      _
    // Predicated region
    $region62: #{policy_forward.1} parent=1 // pred_check
      _
    $region63: #{policy_forward.1} parent=1 // pred_check_branch
      %134 = sbr.rel (0) target = $region65
    $region64: #{policy_forward.1} parent=1 // pred_region
      %136 = dma.done [#allocation11], 16
    $region65: #{policy_forward.1} parent=1 // pred_fallthru
      _
    %v138 = vld [vmem:[#allocation2] sm:$0xff]
    %v139 = vld [vmem:[#allocation2 + $0x8] sm:$0xff]
    %v140 = vpack.c.bf16 %v139, %v138
    %v141 = vld [vmem:[#allocation4] sm:$0xff]
    %v142 = vld [vmem:[#allocation4 + $0x8] sm:$0xff]
    %v143 = vld [vmem:[#allocation4 + $0x10] sm:$0xff]
    %v144 = vld [vmem:[%s2] sm:$0x3]
    %v146 = vperm.slane %v144, 0
    %v147 = vperm.slane %v144, 1
    %v153 = vunpack.c.l.b16 %v141
    %v154 = vunpack.c.h.b16 %v141
    %v155 = vunpack.c.l.b16 %v142
    %v156 = vunpack.c.h.b16 %v142
    %v157 = vunpack.c.l.b16 %v143
    %v158 = vunpack.c.h.b16 %v143
    %v159 = vpack.c.b16 %v155, %v153
    %v160 = vpack.c.b16 %v156, %v154
    %v161 = vpack.c.b16 %v157, %v157
    %v162 = vpack.c.b16 %v158, %v158
    %vm165 = vcmask 195584
    %v167 = vsel %vm165, %v140, 0
    %vm169 = vcmask 1043456
    %v171 = vsel %vm169, %v161, 0
    %v174 = vsel %vm169, %v162, 0
    %176 = vmatpush.bf16.msra.mxu0 0
    %177 = vmatpush.bf16.msra.mxu0 0
    %178 = vmatpush.bf16.msra.mxu0 0
    %179 = vmatpush.bf16.msra.mxu0 0
    %180 = vmatpush.bf16.msra.mxu0 0
    %181 = vmatpush.bf16.msra.mxu0 0
    %182 = vmatpush.bf16.msra.mxu0 %v171
    %183 = vmatpush.bf16.msra.mxu0 %v159
    %184 = vmatmul.bf16.gmra.mxu0 %v167
    %v185 = vpop.f32.mrf.mxu0
    %v186 = vadd.f32 %v146, %v185
    %v187 = vpop.f32.mrf.mxu0
    %v188 = vadd.f32 %v146, %v187
    %189 = vdwg.mxu0
    %190 = vmatpush.bf16.msra.mxu0 0
    %191 = vmatpush.bf16.msra.mxu0 0
    %192 = vmatpush.bf16.msra.mxu0 0
    %193 = vmatpush.bf16.msra.mxu0 0
    %194 = vmatpush.bf16.msra.mxu0 0
    %195 = vmatpush.bf16.msra.mxu0 0
    %196 = vmatpush.bf16.msra.mxu0 %v174
    %197 = vmatpush.bf16.msra.mxu0 %v160
    %198 = vmatmul.bf16.gmra.mxu0 %v167
    %v199 = vpop.f32.mrf.mxu0
    %v200 = vadd.f32 %v147, %v199
    %v201 = vpop.f32.mrf.mxu0
    %v202 = vadd.f32 %v147, %v201
    %203 = vdwg.mxu0
    %v204 = vtanh.pop %v186
    %v205 = vtanh.pop %v200
    %v206 = vtanh.pop %v188
    %v207 = vtanh.pop %v202
    %v208 = vpack.c.bf16 %v206, %v204
    %v209 = vpack.c.bf16 %v207, %v205
    %v210 = vld [vmem:[#allocation6] sm:$0xff]
    %v211 = vld [vmem:[#allocation6 + $0x8] sm:$0xff]
    %v212 = vld [vmem:[#allocation6 + $0x10] sm:$0xff]
    %v213 = vld [vmem:[#allocation6 + $0x18] sm:$0xff]
    %v214 = vld [vmem:[#allocation6 + $0x20] sm:$0xff]
    %v215 = vld [vmem:[#allocation6 + $0x28] sm:$0xff]
    %v216 = vld [vmem:[#allocation6 + $0x30] sm:$0xff]
    %v217 = vld [vmem:[#allocation6 + $0x38] sm:$0xff]
    %v218 = vld [vmem:[#allocation6 + $0x40] sm:$0xff]
    %v219 = vld [vmem:[#allocation6 + $0x48] sm:$0xff]
    %v220 = vld [vmem:[#allocation6 + $0x50] sm:$0xff]
    %v221 = vld [vmem:[#allocation6 + $0x58] sm:$0xff]
    %v222 = vld [vmem:[#allocation6 + $0x60] sm:$0xff]
    %v223 = vld [vmem:[#allocation6 + $0x68] sm:$0xff]
    %v224 = vld [vmem:[#allocation6 + $0x70] sm:$0xff]
    %v225 = vld [vmem:[#allocation6 + $0x78] sm:$0xff]
    %v226 = vld [vmem:[#allocation6 + $0x80] sm:$0xff]
    %v227 = vld [vmem:[#allocation6 + $0x88] sm:$0xff]
    %v228 = vld [vmem:[#allocation6 + $0x90] sm:$0xff]
    %v229 = vld [vmem:[#allocation6 + $0x98] sm:$0xff]
    %v230 = vld [vmem:[#allocation6 + $0xa0] sm:$0xff]
    %v231 = vld [vmem:[#allocation6 + $0xa8] sm:$0xff]
    %v232 = vld [vmem:[#allocation6 + $0xb0] sm:$0xff]
    %v233 = vld [vmem:[#allocation6 + $0xb8] sm:$0xff]
    %v234 = vld [vmem:[#allocation6 + $0xc0] sm:$0xff]
    %v235 = vld [vmem:[#allocation6 + $0xc8] sm:$0xff]
    %v236 = vld [vmem:[#allocation6 + $0xd0] sm:$0xff]
    %v237 = vld [vmem:[#allocation6 + $0xd8] sm:$0xff]
    %v238 = vld [vmem:[#allocation6 + $0xe0] sm:$0xff]
    %v239 = vld [vmem:[#allocation6 + $0xe8] sm:$0xff]
    %v240 = vld [vmem:[#allocation6 + $0xf0] sm:$0xff]
    %v241 = vld [vmem:[#allocation6 + $0xf8] sm:$0xff]
    %v242 = vld [vmem:[%s4] sm:$0x3]
    %v244 = vperm.slane %v242, 0
    %v245 = vperm.slane %v242, 1
    %v280 = vunpack.c.l.b16 %v210
    %v281 = vunpack.c.h.b16 %v210
    %v282 = vunpack.c.l.b16 %v211
    %v283 = vunpack.c.h.b16 %v211
    %v284 = vunpack.c.l.b16 %v212
    %v285 = vunpack.c.h.b16 %v212
    %v286 = vunpack.c.l.b16 %v213
    %v287 = vunpack.c.h.b16 %v213
    %v288 = vunpack.c.l.b16 %v214
    %v289 = vunpack.c.h.b16 %v214
    %v290 = vunpack.c.l.b16 %v215
    %v291 = vunpack.c.h.b16 %v215
    %v292 = vunpack.c.l.b16 %v216
    %v293 = vunpack.c.h.b16 %v216
    %v294 = vunpack.c.l.b16 %v217
    %v295 = vunpack.c.h.b16 %v217
    %v296 = vunpack.c.l.b16 %v218
    %v297 = vunpack.c.h.b16 %v218
    %v298 = vunpack.c.l.b16 %v219
    %v299 = vunpack.c.h.b16 %v219
    %v300 = vunpack.c.l.b16 %v220
    %v301 = vunpack.c.h.b16 %v220
    %v302 = vunpack.c.l.b16 %v221
    %v303 = vunpack.c.h.b16 %v221
    %v304 = vunpack.c.l.b16 %v222
    %v305 = vunpack.c.h.b16 %v222
    %v306 = vunpack.c.l.b16 %v223
    %v307 = vunpack.c.h.b16 %v223
    %v308 = vunpack.c.l.b16 %v224
    %v309 = vunpack.c.h.b16 %v224
    %v310 = vunpack.c.l.b16 %v225
    %v311 = vunpack.c.h.b16 %v225
    %v312 = vunpack.c.l.b16 %v226
    %v313 = vunpack.c.h.b16 %v226
    %v314 = vunpack.c.l.b16 %v227
    %v315 = vunpack.c.h.b16 %v227
    %v316 = vunpack.c.l.b16 %v228
    %v317 = vunpack.c.h.b16 %v228
    %v318 = vunpack.c.l.b16 %v229
    %v319 = vunpack.c.h.b16 %v229
    %v320 = vunpack.c.l.b16 %v230
    %v321 = vunpack.c.h.b16 %v230
    %v322 = vunpack.c.l.b16 %v231
    %v323 = vunpack.c.h.b16 %v231
    %v324 = vunpack.c.l.b16 %v232
    %v325 = vunpack.c.h.b16 %v232
    %v326 = vunpack.c.l.b16 %v233
    %v327 = vunpack.c.h.b16 %v233
    %v328 = vunpack.c.l.b16 %v234
    %v329 = vunpack.c.h.b16 %v234
    %v330 = vunpack.c.l.b16 %v235
    %v331 = vunpack.c.h.b16 %v235
    %v332 = vunpack.c.l.b16 %v236
    %v333 = vunpack.c.h.b16 %v236
    %v334 = vunpack.c.l.b16 %v237
    %v335 = vunpack.c.h.b16 %v237
    %v336 = vunpack.c.l.b16 %v238
    %v337 = vunpack.c.h.b16 %v238
    %v338 = vunpack.c.l.b16 %v239
    %v339 = vunpack.c.h.b16 %v239
    %v340 = vunpack.c.l.b16 %v240
    %v341 = vunpack.c.h.b16 %v240
    %v342 = vunpack.c.l.b16 %v241
    %v343 = vunpack.c.h.b16 %v241
    %v344 = vpack.c.b16 %v282, %v280
    %v345 = vpack.c.b16 %v283, %v281
    %v346 = vpack.c.b16 %v286, %v284
    %v347 = vpack.c.b16 %v287, %v285
    %v348 = vpack.c.b16 %v290, %v288
    %v349 = vpack.c.b16 %v291, %v289
    %v350 = vpack.c.b16 %v294, %v292
    %v351 = vpack.c.b16 %v295, %v293
    %v352 = vpack.c.b16 %v298, %v296
    %v353 = vpack.c.b16 %v299, %v297
    %v354 = vpack.c.b16 %v302, %v300
    %v355 = vpack.c.b16 %v303, %v301
    %v356 = vpack.c.b16 %v306, %v304
    %v357 = vpack.c.b16 %v307, %v305
    %v358 = vpack.c.b16 %v310, %v308
    %v359 = vpack.c.b16 %v311, %v309
    %v360 = vpack.c.b16 %v314, %v312
    %v361 = vpack.c.b16 %v315, %v313
    %v362 = vpack.c.b16 %v318, %v316
    %v363 = vpack.c.b16 %v319, %v317
    %v364 = vpack.c.b16 %v322, %v320
    %v365 = vpack.c.b16 %v323, %v321
    %v366 = vpack.c.b16 %v326, %v324
    %v367 = vpack.c.b16 %v327, %v325
    %v368 = vpack.c.b16 %v330, %v328
    %v369 = vpack.c.b16 %v331, %v329
    %v370 = vpack.c.b16 %v334, %v332
    %v371 = vpack.c.b16 %v335, %v333
    %v372 = vpack.c.b16 %v338, %v336
    %v373 = vpack.c.b16 %v339, %v337
    %v374 = vpack.c.b16 %v342, %v340
    %v375 = vpack.c.b16 %v343, %v341
    %408 = vmatpush.bf16.msra.mxu0 %v358
    %409 = vmatpush.bf16.msra.mxu0 %v356
    %410 = vmatpush.bf16.msra.mxu0 %v354
    %411 = vmatpush.bf16.msra.mxu0 %v352
    %412 = vmatpush.bf16.msra.mxu0 %v350
    %413 = vmatpush.bf16.msra.mxu0 %v348
    %414 = vmatpush.bf16.msra.mxu0 %v346
    %415 = vmatpush.bf16.msra.mxu0 %v344
    %416 = vmatmul.bf16.gmra.mxu0 %v208
    %v417 = vpop.f32.mrf.mxu0
    %v418 = vadd.f32 %v244, %v417
    %v419 = vpop.f32.mrf.mxu0
    %v420 = vadd.f32 %v244, %v419
    %421 = vdwg.mxu0
    %422 = vmatpush.bf16.msra.mxu0 %v374
    %423 = vmatpush.bf16.msra.mxu0 %v372
    %424 = vmatpush.bf16.msra.mxu0 %v370
    %425 = vmatpush.bf16.msra.mxu0 %v368
    %426 = vmatpush.bf16.msra.mxu0 %v366
    %427 = vmatpush.bf16.msra.mxu0 %v364
    %428 = vmatpush.bf16.msra.mxu0 %v362
    %429 = vmatpush.bf16.msra.mxu0 %v360
    %430 = vmatmul.bf16.gmra.mxu0 %v209
    %v431 = vpop.f32.mrf.mxu0
    %v432 = vadd.f32 %v418, %v431
    %v433 = vpop.f32.mrf.mxu0
    %v434 = vadd.f32 %v420, %v433
    %435 = vdwg.mxu0
    %436 = vmatpush.bf16.msra.mxu0 %v359
    %437 = vmatpush.bf16.msra.mxu0 %v357
    %438 = vmatpush.bf16.msra.mxu0 %v355
    %439 = vmatpush.bf16.msra.mxu0 %v353
    %440 = vmatpush.bf16.msra.mxu0 %v351
    %441 = vmatpush.bf16.msra.mxu0 %v349
    %442 = vmatpush.bf16.msra.mxu0 %v347
    %443 = vmatpush.bf16.msra.mxu0 %v345
    %444 = vmatmul.bf16.gmra.mxu0 %v208
    %v445 = vpop.f32.mrf.mxu0
    %v446 = vadd.f32 %v245, %v445
    %v447 = vpop.f32.mrf.mxu0
    %v448 = vadd.f32 %v245, %v447
    %449 = vdwg.mxu0
    %450 = vmatpush.bf16.msra.mxu0 %v375
    %451 = vmatpush.bf16.msra.mxu0 %v373
    %452 = vmatpush.bf16.msra.mxu0 %v371
    %453 = vmatpush.bf16.msra.mxu0 %v369
    %454 = vmatpush.bf16.msra.mxu0 %v367
    %455 = vmatpush.bf16.msra.mxu0 %v365
    %456 = vmatpush.bf16.msra.mxu0 %v363
    %457 = vmatpush.bf16.msra.mxu0 %v361
    %458 = vmatmul.bf16.gmra.mxu0 %v209
    %v459 = vpop.f32.mrf.mxu0
    %v460 = vadd.f32 %v446, %v459
    %v461 = vpop.f32.mrf.mxu0
    %v462 = vadd.f32 %v448, %v461
    %463 = vdwg.mxu0
    %v464 = vtanh.pop %v432
    %v465 = vtanh.pop %v460
    %v466 = vtanh.pop %v434
    %v467 = vtanh.pop %v462
    %v468 = vpack.c.bf16 %v466, %v464
    %v469 = vpack.c.bf16 %v467, %v465
    %v470 = vld [vmem:[#allocation7] sm:$0xff]
    %v471 = vld [vmem:[#allocation7 + $0x8] sm:$0xff]
    %v472 = vld [vmem:[#allocation7 + $0x10] sm:$0xff]
    %v473 = vld [vmem:[#allocation7 + $0x18] sm:$0xff]
    %v474 = vld [vmem:[#allocation7 + $0x20] sm:$0xff]
    %v475 = vld [vmem:[#allocation7 + $0x28] sm:$0xff]
    %v476 = vld [vmem:[#allocation7 + $0x30] sm:$0xff]
    %v477 = vld [vmem:[#allocation7 + $0x38] sm:$0xff]
    %v478 = vld [vmem:[#allocation7 + $0x40] sm:$0xff]
    %v479 = vld [vmem:[#allocation7 + $0x48] sm:$0xff]
    %v480 = vld [vmem:[#allocation7 + $0x50] sm:$0xff]
    %v481 = vld [vmem:[#allocation7 + $0x58] sm:$0xff]
    %v482 = vld [vmem:[#allocation7 + $0x60] sm:$0xff]
    %v483 = vld [vmem:[#allocation7 + $0x68] sm:$0xff]
    %v484 = vld [vmem:[#allocation7 + $0x70] sm:$0xff]
    %v485 = vld [vmem:[#allocation7 + $0x78] sm:$0xff]
    %v486 = vld [vmem:[#allocation7 + $0x80] sm:$0xff]
    %v487 = vld [vmem:[#allocation7 + $0x88] sm:$0xff]
    %v488 = vld [vmem:[#allocation7 + $0x90] sm:$0xff]
    %v489 = vld [vmem:[#allocation7 + $0x98] sm:$0xff]
    %v490 = vld [vmem:[#allocation7 + $0xa0] sm:$0xff]
    %v491 = vld [vmem:[#allocation7 + $0xa8] sm:$0xff]
    %v492 = vld [vmem:[#allocation7 + $0xb0] sm:$0xff]
    %v493 = vld [vmem:[#allocation7 + $0xb8] sm:$0xff]
    %v494 = vld [vmem:[#allocation7 + $0xc0] sm:$0xff]
    %v495 = vld [vmem:[#allocation7 + $0xc8] sm:$0xff]
    %v496 = vld [vmem:[#allocation7 + $0xd0] sm:$0xff]
    %v497 = vld [vmem:[#allocation7 + $0xd8] sm:$0xff]
    %v498 = vld [vmem:[#allocation7 + $0xe0] sm:$0xff]
    %v499 = vld [vmem:[#allocation7 + $0xe8] sm:$0xff]
    %v500 = vld [vmem:[#allocation7 + $0xf0] sm:$0xff]
    %v501 = vld [vmem:[#allocation7 + $0xf8] sm:$0xff]
    %v502 = vld [vmem:[#allocation9] sm:$0x3]
    %v504 = vperm.slane %v502, 0
    %v505 = vperm.slane %v502, 1
    %v540 = vunpack.c.l.b16 %v470
    %v541 = vunpack.c.h.b16 %v470
    %v542 = vunpack.c.l.b16 %v471
    %v543 = vunpack.c.h.b16 %v471
    %v544 = vunpack.c.l.b16 %v472
    %v545 = vunpack.c.h.b16 %v472
    %v546 = vunpack.c.l.b16 %v473
    %v547 = vunpack.c.h.b16 %v473
    %v548 = vunpack.c.l.b16 %v474
    %v549 = vunpack.c.h.b16 %v474
    %v550 = vunpack.c.l.b16 %v475
    %v551 = vunpack.c.h.b16 %v475
    %v552 = vunpack.c.l.b16 %v476
    %v553 = vunpack.c.h.b16 %v476
    %v554 = vunpack.c.l.b16 %v477
    %v555 = vunpack.c.h.b16 %v477
    %v556 = vunpack.c.l.b16 %v478
    %v557 = vunpack.c.h.b16 %v478
    %v558 = vunpack.c.l.b16 %v479
    %v559 = vunpack.c.h.b16 %v479
    %v560 = vunpack.c.l.b16 %v480
    %v561 = vunpack.c.h.b16 %v480
    %v562 = vunpack.c.l.b16 %v481
    %v563 = vunpack.c.h.b16 %v481
    %v564 = vunpack.c.l.b16 %v482
    %v565 = vunpack.c.h.b16 %v482
    %v566 = vunpack.c.l.b16 %v483
    %v567 = vunpack.c.h.b16 %v483
    %v568 = vunpack.c.l.b16 %v484
    %v569 = vunpack.c.h.b16 %v484
    %v570 = vunpack.c.l.b16 %v485
    %v571 = vunpack.c.h.b16 %v485
    %v572 = vunpack.c.l.b16 %v486
    %v573 = vunpack.c.h.b16 %v486
    %v574 = vunpack.c.l.b16 %v487
    %v575 = vunpack.c.h.b16 %v487
    %v576 = vunpack.c.l.b16 %v488
    %v577 = vunpack.c.h.b16 %v488
    %v578 = vunpack.c.l.b16 %v489
    %v579 = vunpack.c.h.b16 %v489
    %v580 = vunpack.c.l.b16 %v490
    %v581 = vunpack.c.h.b16 %v490
    %v582 = vunpack.c.l.b16 %v491
    %v583 = vunpack.c.h.b16 %v491
    %v584 = vunpack.c.l.b16 %v492
    %v585 = vunpack.c.h.b16 %v492
    %v586 = vunpack.c.l.b16 %v493
    %v587 = vunpack.c.h.b16 %v493
    %v588 = vunpack.c.l.b16 %v494
    %v589 = vunpack.c.h.b16 %v494
    %v590 = vunpack.c.l.b16 %v495
    %v591 = vunpack.c.h.b16 %v495
    %v592 = vunpack.c.l.b16 %v496
    %v593 = vunpack.c.h.b16 %v496
    %v594 = vunpack.c.l.b16 %v497
    %v595 = vunpack.c.h.b16 %v497
    %v596 = vunpack.c.l.b16 %v498
    %v597 = vunpack.c.h.b16 %v498
    %v598 = vunpack.c.l.b16 %v499
    %v599 = vunpack.c.h.b16 %v499
    %v600 = vunpack.c.l.b16 %v500
    %v601 = vunpack.c.h.b16 %v500
    %v602 = vunpack.c.l.b16 %v501
    %v603 = vunpack.c.h.b16 %v501
    %v604 = vpack.c.b16 %v542, %v540
    %v605 = vpack.c.b16 %v543, %v541
    %v606 = vpack.c.b16 %v546, %v544
    %v607 = vpack.c.b16 %v547, %v545
    %v608 = vpack.c.b16 %v550, %v548
    %v609 = vpack.c.b16 %v551, %v549
    %v610 = vpack.c.b16 %v554, %v552
    %v611 = vpack.c.b16 %v555, %v553
    %v612 = vpack.c.b16 %v558, %v556
    %v613 = vpack.c.b16 %v559, %v557
    %v614 = vpack.c.b16 %v562, %v560
    %v615 = vpack.c.b16 %v563, %v561
    %v616 = vpack.c.b16 %v566, %v564
    %v617 = vpack.c.b16 %v567, %v565
    %v618 = vpack.c.b16 %v570, %v568
    %v619 = vpack.c.b16 %v571, %v569
    %v620 = vpack.c.b16 %v574, %v572
    %v621 = vpack.c.b16 %v575, %v573
    %v622 = vpack.c.b16 %v578, %v576
    %v623 = vpack.c.b16 %v579, %v577
    %v624 = vpack.c.b16 %v582, %v580
    %v625 = vpack.c.b16 %v583, %v581
    %v626 = vpack.c.b16 %v586, %v584
    %v627 = vpack.c.b16 %v587, %v585
    %v628 = vpack.c.b16 %v590, %v588
    %v629 = vpack.c.b16 %v591, %v589
    %v630 = vpack.c.b16 %v594, %v592
    %v631 = vpack.c.b16 %v595, %v593
    %v632 = vpack.c.b16 %v598, %v596
    %v633 = vpack.c.b16 %v599, %v597
    %v634 = vpack.c.b16 %v602, %v600
    %v635 = vpack.c.b16 %v603, %v601
    %668 = vmatpush.bf16.msra.mxu0 %v618
    %669 = vmatpush.bf16.msra.mxu0 %v616
    %670 = vmatpush.bf16.msra.mxu0 %v614
    %671 = vmatpush.bf16.msra.mxu0 %v612
    %672 = vmatpush.bf16.msra.mxu0 %v610
    %673 = vmatpush.bf16.msra.mxu0 %v608
    %674 = vmatpush.bf16.msra.mxu0 %v606
    %675 = vmatpush.bf16.msra.mxu0 %v604
    %676 = vmatmul.bf16.gmra.mxu0 %v468
    %v677 = vpop.f32.mrf.mxu0
    %v678 = vadd.f32 %v504, %v677
    %v679 = vpop.f32.mrf.mxu0
    %v680 = vadd.f32 %v504, %v679
    %681 = vdwg.mxu0
    %682 = vmatpush.bf16.msra.mxu0 %v634
    %683 = vmatpush.bf16.msra.mxu0 %v632
    %684 = vmatpush.bf16.msra.mxu0 %v630
    %685 = vmatpush.bf16.msra.mxu0 %v628
    %686 = vmatpush.bf16.msra.mxu0 %v626
    %687 = vmatpush.bf16.msra.mxu0 %v624
    %688 = vmatpush.bf16.msra.mxu0 %v622
    %689 = vmatpush.bf16.msra.mxu0 %v620
    %690 = vmatmul.bf16.gmra.mxu0 %v469
    %v691 = vpop.f32.mrf.mxu0
    %v692 = vadd.f32 %v678, %v691
    %v693 = vpop.f32.mrf.mxu0
    %v694 = vadd.f32 %v680, %v693
    %695 = vdwg.mxu0
    %696 = vmatpush.bf16.msra.mxu0 %v619
    %697 = vmatpush.bf16.msra.mxu0 %v617
    %698 = vmatpush.bf16.msra.mxu0 %v615
    %699 = vmatpush.bf16.msra.mxu0 %v613
    %700 = vmatpush.bf16.msra.mxu0 %v611
    %701 = vmatpush.bf16.msra.mxu0 %v609
    %702 = vmatpush.bf16.msra.mxu0 %v607
    %703 = vmatpush.bf16.msra.mxu0 %v605
    %704 = vmatmul.bf16.gmra.mxu0 %v468
    %v705 = vpop.f32.mrf.mxu0
    %v706 = vadd.f32 %v505, %v705
    %v707 = vpop.f32.mrf.mxu0
    %v708 = vadd.f32 %v505, %v707
    %709 = vdwg.mxu0
    %710 = vmatpush.bf16.msra.mxu0 %v635
    %711 = vmatpush.bf16.msra.mxu0 %v633
    %712 = vmatpush.bf16.msra.mxu0 %v631
    %713 = vmatpush.bf16.msra.mxu0 %v629
    %714 = vmatpush.bf16.msra.mxu0 %v627
    %715 = vmatpush.bf16.msra.mxu0 %v625
    %716 = vmatpush.bf16.msra.mxu0 %v623
    %717 = vmatpush.bf16.msra.mxu0 %v621
    %718 = vmatmul.bf16.gmra.mxu0 %v469
    %v719 = vpop.f32.mrf.mxu0
    %v720 = vadd.f32 %v706, %v719
    %v721 = vpop.f32.mrf.mxu0
    %v722 = vadd.f32 %v708, %v721
    %723 = vdwg.mxu0
    %v724 = vtanh.pop %v692
    %v725 = vtanh.pop %v720
    %v726 = vtanh.pop %v694
    %v727 = vtanh.pop %v722
    %v728 = vpack.c.bf16 %v726, %v724
    %v729 = vpack.c.bf16 %v727, %v725
    %v730 = vld [vmem:[#allocation10] sm:$0xf]
    %v731 = vld [vmem:[#allocation10 + $0x4] sm:$0xf]
    %v732 = vld [vmem:[#allocation10 + $0x8] sm:$0xf]
    %v733 = vld [vmem:[#allocation10 + $0xc] sm:$0xf]
    %v734 = vld [vmem:[#allocation10 + $0x10] sm:$0xf]
    %v735 = vld [vmem:[#allocation10 + $0x14] sm:$0xf]
    %v736 = vld [vmem:[#allocation10 + $0x18] sm:$0xf]
    %v737 = vld [vmem:[#allocation10 + $0x1c] sm:$0xf]
    %v738 = vld [vmem:[#allocation10 + $0x20] sm:$0xf]
    %v739 = vld [vmem:[#allocation10 + $0x24] sm:$0xf]
    %v740 = vld [vmem:[#allocation10 + $0x28] sm:$0xf]
    %v741 = vld [vmem:[#allocation10 + $0x2c] sm:$0xf]
    %v742 = vld [vmem:[#allocation10 + $0x30] sm:$0xf]
    %v743 = vld [vmem:[#allocation10 + $0x34] sm:$0xf]
    %v744 = vld [vmem:[#allocation10 + $0x38] sm:$0xf]
    %v745 = vld [vmem:[#allocation10 + $0x3c] sm:$0xf]
    %v746 = vld [vmem:[#allocation10 + $0x40] sm:$0xf]
    %v747 = vld [vmem:[#allocation10 + $0x44] sm:$0xf]
    %v748 = vld [vmem:[#allocation10 + $0x48] sm:$0xf]
    %v749 = vld [vmem:[#allocation10 + $0x4c] sm:$0xf]
    %v750 = vld [vmem:[#allocation10 + $0x50] sm:$0xf]
    %v751 = vld [vmem:[#allocation10 + $0x54] sm:$0xf]
    %v752 = vld [vmem:[#allocation10 + $0x58] sm:$0xf]
    %v753 = vld [vmem:[#allocation10 + $0x5c] sm:$0xf]
    %v754 = vld [vmem:[#allocation10 + $0x60] sm:$0xf]
    %v755 = vld [vmem:[#allocation10 + $0x64] sm:$0xf]
    %v756 = vld [vmem:[#allocation10 + $0x68] sm:$0xf]
    %v757 = vld [vmem:[#allocation10 + $0x6c] sm:$0xf]
    %v758 = vld [vmem:[#allocation10 + $0x70] sm:$0xf]
    %v759 = vld [vmem:[#allocation10 + $0x74] sm:$0xf]
    %v760 = vld [vmem:[#allocation10 + $0x78] sm:$0xf]
    %v761 = vld [vmem:[#allocation10 + $0x7c] sm:$0xf]
    %v762 = vld [vmem:[#allocation12] sm:$0x1]
    %v764 = vperm.slane %v762, 0
    %v798 = vunpack.c.l.b16 %v730
    %v799 = vunpack.c.l.b16 %v731
    %v800 = vunpack.c.l.b16 %v732
    %v801 = vunpack.c.l.b16 %v733
    %v802 = vunpack.c.l.b16 %v734
    %v803 = vunpack.c.l.b16 %v735
    %v804 = vunpack.c.l.b16 %v736
    %v805 = vunpack.c.l.b16 %v737
    %v806 = vunpack.c.l.b16 %v738
    %v807 = vunpack.c.l.b16 %v739
    %v808 = vunpack.c.l.b16 %v740
    %v809 = vunpack.c.l.b16 %v741
    %v810 = vunpack.c.l.b16 %v742
    %v811 = vunpack.c.l.b16 %v743
    %v812 = vunpack.c.l.b16 %v744
    %v813 = vunpack.c.l.b16 %v745
    %v814 = vunpack.c.l.b16 %v746
    %v815 = vunpack.c.l.b16 %v747
    %v816 = vunpack.c.l.b16 %v748
    %v817 = vunpack.c.l.b16 %v749
    %v818 = vunpack.c.l.b16 %v750
    %v819 = vunpack.c.l.b16 %v751
    %v820 = vunpack.c.l.b16 %v752
    %v821 = vunpack.c.l.b16 %v753
    %v822 = vunpack.c.l.b16 %v754
    %v823 = vunpack.c.l.b16 %v755
    %v824 = vunpack.c.l.b16 %v756
    %v825 = vunpack.c.l.b16 %v757
    %v826 = vunpack.c.l.b16 %v758
    %v827 = vunpack.c.l.b16 %v759
    %v828 = vunpack.c.l.b16 %v760
    %v829 = vunpack.c.l.b16 %v761
    %v830 = vpack.c.b16 %v799, %v798
    %v831 = vpack.c.b16 %v801, %v800
    %v832 = vpack.c.b16 %v803, %v802
    %v833 = vpack.c.b16 %v805, %v804
    %v834 = vpack.c.b16 %v807, %v806
    %v835 = vpack.c.b16 %v809, %v808
    %v836 = vpack.c.b16 %v811, %v810
    %v837 = vpack.c.b16 %v813, %v812
    %v838 = vpack.c.b16 %v815, %v814
    %v839 = vpack.c.b16 %v817, %v816
    %v840 = vpack.c.b16 %v819, %v818
    %v841 = vpack.c.b16 %v821, %v820
    %v842 = vpack.c.b16 %v823, %v822
    %v843 = vpack.c.b16 %v825, %v824
    %v844 = vpack.c.b16 %v827, %v826
    %v845 = vpack.c.b16 %v829, %v828
    %862 = vmatpush.bf16.msra.mxu0 %v837
    %863 = vmatpush.bf16.msra.mxu0 %v836
    %864 = vmatpush.bf16.msra.mxu0 %v835
    %865 = vmatpush.bf16.msra.mxu0 %v834
    %866 = vmatpush.bf16.msra.mxu0 %v833
    %867 = vmatpush.bf16.msra.mxu0 %v832
    %868 = vmatpush.bf16.msra.mxu0 %v831
    %869 = vmatpush.bf16.msra.mxu0 %v830
    %870 = vmatmul.bf16.gmra.mxu0 %v728
    %v871 = vpop.f32.mrf.mxu0
    %v872 = vadd.f32 %v764, %v871
    %v873 = vpop.f32.mrf.mxu0
    %v874 = vadd.f32 %v764, %v873
    %875 = vdwg.mxu0
    %876 = vmatpush.bf16.msra.mxu0 %v845
    %877 = vmatpush.bf16.msra.mxu0 %v844
    %878 = vmatpush.bf16.msra.mxu0 %v843
    %879 = vmatpush.bf16.msra.mxu0 %v842
    %880 = vmatpush.bf16.msra.mxu0 %v841
    %881 = vmatpush.bf16.msra.mxu0 %v840
    %882 = vmatpush.bf16.msra.mxu0 %v839
    %883 = vmatpush.bf16.msra.mxu0 %v838
    %884 = vmatmul.bf16.gmra.mxu0 %v729
    %v885 = vpop.f32.mrf.mxu0
    %v886 = vadd.f32 %v872, %v885
    %v887 = vpop.f32.mrf.mxu0
    %v888 = vadd.f32 %v874, %v887
    %889 = vdwg.mxu0
    %v890 = vlaneseq
    %v891 = vand.u32 %v890, 127
    %vm892 = vcmp.lt.s32.totalorder %v891, 4
    %v893 = vtanh.pop %v886
    %v894 = vtanh.pop %v888
    %v895 = vsel %vm892, 1, 0
    %vm896 = vcmp.eq.s32.totalorder %v895, 1
    %v897 = vsel %vm896, %v893, %v886
    %v898 = vsel %vm896, %v894, %v888
    %899 = vst [vmem:[%s9] sm:$0xff] %v897
    %900 = vst [vmem:[%s9 + $0x8] sm:$0xff] %v898
    // Predicated region
    $region66: #{policy_forward.1} parent=1 // pred_check
      _
    $region67: #{policy_forward.1} parent=1 // pred_check_branch
      %902 = sbr.rel (0) target = $region69
    $region68: #{policy_forward.1} parent=1 // pred_region
      _
    $region69: #{policy_forward.1} parent=1 // pred_fallthru
      _
    // Predicated region
    $region70: #{policy_forward.1} parent=1 // pred_check
      _
    $region71: #{policy_forward.1} parent=1 // pred_check_branch
      %904 = sbr.rel (0) target = $region73
    $region72: #{policy_forward.1} parent=1 // pred_region
      _
    $region73: #{policy_forward.1} parent=1 // pred_fallthru
      _
    %905 = vsyncpa [#allocation3], 1
    %906 = vsyncpa [#allocation5], 1
    %907 = vsyncpa [#allocation8], 1
    %908 = vsyncpa [#allocation11], 1

</llo_original>
